<compile_context>
chip_gen: v7x
topology: tpu7x:2x2x1
jax: 0.10.0
libtpu: 0.0.40
codegen_flags: <defaults>
</compile_context>

<pallas_src>
import numpy as np
import jax
import jax.numpy as jnp
from jax.experimental import pallas as pl
from jax.experimental.pallas import tpu as pltpu


# ----------------------------------------------------------------------------- helpers

def _vmem_capacity_bytes():
    """Physical VMEM capacity (bytes); falls back to v7x's 64 MiB."""
    cap = 64 * 1024 * 1024
    try:
        cap = int(getattr(pltpu.get_tpu_info(), "vmem_capacity_bytes", cap))
    except Exception:
        pass
    return max(min(cap, 128 * 1024 * 1024), 32 * 1024 * 1024)


def _choose_row_tile(n_rows, per_row_stream_bytes, stream_budget, cap=1024):
    """Largest MXU-aligned row tile whose (double-buffered) streams fit the budget.

    per_row_stream_bytes must already include the x2 double-buffer factor.
    """
    if n_rows <= 8:
        return int(n_rows)
    t = int(stream_budget // max(int(per_row_stream_bytes), 1))
    t = min(t, cap, n_rows)
    if t >= n_rows:
        return int(n_rows)
    # 256/128: fill the MXU M dimension; 32: int8 sublane packing; 8: hard minimum.
    for align in (256, 128, 32, 8):
        if t >= align:
            return int((t // align) * align)
    return 8


def _stream_budget(budget, resident_bytes, per_row_stream_bytes, where):
    """VMEM left for the streamed tiles after the resident operands."""
    sb = int(budget - resident_bytes)
    if sb < 8 * int(per_row_stream_bytes):
        # TODO(synk): fall back to a 2-D (row x K) tiled variant with an f32
        # accumulator scratch (needed for very large N, especially on v7x) instead
        # of failing when the resident operands overflow the VMEM budget.
        raise ValueError(
            f"{where}: resident operands ({resident_bytes / 2**20:.1f} MiB) leave no "
            f"room for the streamed tiles inside the VMEM budget "
            f"({budget / 2**20:.1f} MiB).")
    return sb


def _vmem_spec():
    return pl.BlockSpec(memory_space=pltpu.MemorySpace.VMEM)


def _smem_spec():
    return pl.BlockSpec(memory_space=pltpu.MemorySpace.SMEM)


# ----------------------------------------------------------------------------- kernels

def _make_pass1_kernel(project_after, packed_masks):
    """Pass 1: fold the dual weighted adjacencies into A and emit s2 = h1 @ Wg2.

    Ref order (inputs then outputs):
      wv, adj, [code | adj_v, adj_e], rhs1, [Wg1 if project_after], Wg2, 2*bg1,
      A_out, s2_out
    """
    def kernel(*refs):
        it = iter(refs)
        wv_ref = next(it)
        adj_ref = next(it)
        if packed_masks:
            code_ref = next(it)
        else:
            adjv_ref = next(it)
            adje_ref = next(it)
        rhs_ref = next(it)
        wg1_ref = next(it) if project_after else None
        wg2_ref = next(it)
        b1_ref = next(it)
        a_ref = next(it)
        s2_ref = next(it)

        wv = wv_ref[0, 0]
        if packed_masks:
            c = code_ref[...].astype(jnp.int32)          # bit0 = adj_v, bit1 = adj_e
            mv = (c & 1).astype(jnp.float32)
            me = ((c >> 1) & 1).astype(jnp.float32)
        else:
            mv = adjv_ref[...].astype(jnp.float32)
            me = adje_ref[...].astype(jnp.float32)

        # A = adj * (adj_v*wv + adj_e*(2-wv))  ==  A1 + A2   (f32 on the VPU)
        a = adj_ref[...].astype(jnp.float32) * (mv * wv + me * (2.0 - wv))
        a_c = a.astype(a_ref.dtype)
        a_ref[...] = a_c                                 # re-read once by pass 2

        if project_after:
            # (A @ x) @ Wg1 : cheaper when nfeat <= nhid; MXU operands in compute dtype
            ax = jnp.dot(a_c, rhs_ref[...], preferred_element_type=jnp.float32)
            h = jnp.dot(ax.astype(wg1_ref.dtype), wg1_ref[...],
                        preferred_element_type=jnp.float32)
        else:
            # rhs already holds s1 = x @ Wg1
            h = jnp.dot(a_c, rhs_ref[...], preferred_element_type=jnp.float32)
        h1 = jnp.maximum(h + b1_ref[...], 0.0)           # b1 = 2*bg1 (folded host-side)
        # fused layer-2 input projection: s2 = h1 @ Wg2 (h1 never touches HBM)
        s2_ref[...] = jnp.dot(h1.astype(wg2_ref.dtype), wg2_ref[...],
                              preferred_element_type=jnp.float32).astype(s2_ref.dtype)
    return kernel


def _pass2_kernel(a_ref, s2_ref, b2_ref, wrow_ref, z_ref):
    h2 = jnp.dot(a_ref[...], s2_ref[...], preferred_element_type=jnp.float32)
    h2 = jnp.maximum(h2 + b2_ref[...], 0.0)              # b2 = 2*bg2 (folded host-side)
    # Wint folded in: z = h2 @ Wint done as a VPU multiply + lane reduction
    z_ref[...] = jnp.sum(h2 * wrow_ref[...], axis=-1, keepdims=True)


def _pool_score_kernel(pet_ref, zrow_ref, bint_ref, out_ref):
    pet = pet_ref[...].astype(jnp.float32)
    logits = jnp.sum(pet * zrow_ref[...], axis=-1, keepdims=True) + bint_ref[0, 0]
    out_ref[...] = jax.nn.sigmoid(logits)


def _matmul_rows_kernel(x_ref, w_ref, o_ref):
    o_ref[...] = jnp.dot(x_ref[...], w_ref[...],
                         preferred_element_type=jnp.float32).astype(o_ref.dtype)


# ----------------------------------------------------------------------------- wrappers

def _matmul_rows(x, w, out_dtype, budget, vmem_limit):
    """Row-tiled (X @ W).astype(out_dtype), W resident in VMEM (f32 accumulation)."""
    n, k = x.shape
    h = w.shape[1]
    xb = np.dtype(x.dtype).itemsize
    wb = np.dtype(w.dtype).itemsize
    ob = np.dtype(out_dtype).itemsize
    per_row = 2 * (k * xb + h * ob)
    resident = int(w.size) * wb + (1 << 20)
    tn = _choose_row_tile(n, per_row,
                          _stream_budget(budget, resident, per_row, "x@Wg1"))
    return pl.pallas_call(
        _matmul_rows_kernel,
        out_shape=jax.ShapeDtypeStruct((n, h), out_dtype),
        grid=(pl.cdiv(n, tn),),
        in_specs=[pl.BlockSpec((tn, k), lambda i: (i, 0)), _vmem_spec()],
        out_specs=pl.BlockSpec((tn, h), lambda i: (i, 0)),
        compiler_params=pltpu.CompilerParams(
            dimension_semantics=("parallel",), vmem_limit_bytes=vmem_limit),
        cost_estimate=pl.CostEstimate(
            flops=2 * n * k * h, transcendentals=0,
            bytes_accessed=n * k * xb + k * h * wb + n * h * ob),
    )(x, w)


def ahdsle_forward(x, adj, adj_v, adj_e, PeT, wv,
                   Wg1, bg1, Wg2, bg2, Wint, bint,
                   *, compute_dtype=jnp.bfloat16, pack_binary_masks=True):
    """x:(N,F) adj/adj_v/adj_e:(N,N) PeT:(M,N) wv:(1,1) -> (M,1) sigmoid scores.

    compute_dtype is the streaming / MXU operand dtype for all N^2-sized operands
    (bf16 default: every pass is HBM-bandwidth-bound). Accumulation is always f32.
    pack_binary_masks=True assumes adj_v/adj_e are 0/1 indicator matrices and packs
    them into a single int8 code stream (exact); set False for arbitrary weights.
    NOTE: the bf16 fast path is only tolerance-checked at small N below — revalidate
    at production N before relying on it.
    """
    f32 = jnp.float32
    N, nfeat = x.shape
    nhid = Wg1.shape[1]
    M = PeT.shape[0]
    cbytes = np.dtype(compute_dtype).itemsize

    cap = _vmem_capacity_bytes()
    budget = int(cap * 0.60)        # tile-sizing budget (review: 0.6-0.65 of capacity)
    vmem_limit = int(cap * 0.70)    # compiler limit with headroom above the budget

    wv = jnp.asarray(wv, f32).reshape(1, 1)
    bint = jnp.asarray(bint, f32).reshape(1, 1)
    b1x2 = (2.0 * jnp.asarray(bg1, f32)).reshape(1, nhid)   # fold the doubled bias once
    b2x2 = (2.0 * jnp.asarray(bg2, f32)).reshape(1, nhid)
    wrow = jnp.asarray(Wint, f32).reshape(1, nhid)          # (nhid,1) -> (1,nhid) row
    wg1_c = jnp.asarray(Wg1, f32).astype(compute_dtype)
    wg2_c = jnp.asarray(Wg2, f32).astype(compute_dtype)

    adj_s = adj.astype(compute_dtype)                       # streamed adjacency
    if pack_binary_masks:
        # One int8 code stream replaces two f32 mask streams (precompute once per graph).
        code = ((adj_v != 0).astype(jnp.int8) + 2 * (adj_e != 0).astype(jnp.int8))
        mask_args = (code,)
        mask_bytes = 1
    else:
        mask_args = (adj_v.astype(compute_dtype), adj_e.astype(compute_dtype))
        mask_bytes = 2 * cbytes

    # layer-1 matmul order: (A @ x) @ Wg1 when nfeat <= nhid, else A @ (x @ Wg1)
    project_after = nfeat <= nhid
    if project_after:
        rhs1 = x.astype(compute_dtype)                                   # (N, nfeat)
        k1 = nfeat
    else:
        rhs1 = _matmul_rows(x.astype(compute_dtype), wg1_c, compute_dtype,
                            budget, vmem_limit)                          # s1 (N, nhid)
        k1 = nhid

    # -------- pass 1: A = adj*(v*wv + e*(2-wv));  s2 = relu(A @ x @ Wg1 + 2*b1) @ Wg2
    per_row1 = 2 * (N * cbytes + N * mask_bytes + N * cbytes + nhid * cbytes)
    resident1 = (int(rhs1.size) * cbytes
                 + (int(wg1_c.size) * cbytes if project_after else 0)
                 + int(wg2_c.size) * cbytes + 2 * nhid * 4 + (2 << 20))
    tn1 = _choose_row_tile(N, per_row1,
                           _stream_budget(budget, resident1, per_row1, "pass1"))

    row_spec = lambda cols: pl.BlockSpec((tn1, cols), lambda i: (i, 0))
    in_specs1 = ([_smem_spec(), row_spec(N)]
                 + [row_spec(N) for _ in mask_args]
                 + [_vmem_spec()]
                 + ([_vmem_spec()] if project_after else [])
                 + [_vmem_spec(), _vmem_spec()])
    args1 = ((wv, adj_s) + mask_args + (rhs1,)
             + ((wg1_c,) if project_after else ())
             + (wg2_c, b1x2))
    flops1 = (4 * N * N + 2 * N * N * k1 + 2 * N * nhid * nhid + 2 * N * nhid
              + (2 * N * nfeat * nhid if project_after else 0))
    bytes1 = (N * N * (cbytes + mask_bytes)                     # streams in
              + N * N * cbytes + N * nhid * cbytes              # A, s2 out
              + int(rhs1.size) * cbytes + int(wg2_c.size) * cbytes
              + (int(wg1_c.size) * cbytes if project_after else 0))

    A, s2 = pl.pallas_call(
        _make_pass1_kernel(project_after, pack_binary_masks),
        out_shape=(jax.ShapeDtypeStruct((N, N), compute_dtype),
                   jax.ShapeDtypeStruct((N, nhid), compute_dtype)),
        grid=(pl.cdiv(N, tn1),),
        in_specs=in_specs1,
        out_specs=(pl.BlockSpec((tn1, N), lambda i: (i, 0)),
                   pl.BlockSpec((tn1, nhid), lambda i: (i, 0))),
        compiler_params=pltpu.CompilerParams(
            dimension_semantics=("parallel",), vmem_limit_bytes=vmem_limit),
        cost_estimate=pl.CostEstimate(flops=flops1, transcendentals=0,
                                      bytes_accessed=bytes1),
    )(*args1)

    # -------- pass 2: z = relu(A @ s2 + 2*b2) @ Wint   (Wint folded in, h2 never stored)
    per_row2 = 2 * (N * cbytes + 4)
    resident2 = int(s2.size) * cbytes + 2 * nhid * 4 + (2 << 20)
    tn2 = _choose_row_tile(N, per_row2,
                           _stream_budget(budget, resident2, per_row2, "pass2"))
    z = pl.pallas_call(
        _pass2_kernel,
        out_shape=jax.ShapeDtypeStruct((N, 1), f32),
        grid=(pl.cdiv(N, tn2),),
        in_specs=[pl.BlockSpec((tn2, N), lambda i: (i, 0)),     # A      (streamed)
                  _vmem_spec(), _vmem_spec(), _vmem_spec()],    # s2, 2*bg2, Wint row
        out_specs=pl.BlockSpec((tn2, 1), lambda i: (i, 0)),
        compiler_params=pltpu.CompilerParams(
            dimension_semantics=("parallel",), vmem_limit_bytes=vmem_limit),
        cost_estimate=pl.CostEstimate(
            flops=2 * N * N * nhid + 4 * N * nhid, transcendentals=0,
            bytes_accessed=N * N * cbytes + N * nhid * cbytes + N * 4),
    )(A, s2, b2x2, wrow)

    # -------- pass 3: scores = sigmoid(PeT @ z + bint)   (PeT streamed in compute dtype)
    z_row = z.reshape(1, N)                 # tiny relayout handled by XLA outside kernel
    pet_s = PeT.astype(compute_dtype)
    per_row3 = 2 * (N * cbytes + 4)
    resident3 = N * 4 + (1 << 20)
    tm = _choose_row_tile(M, per_row3,
                          _stream_budget(budget, resident3, per_row3, "pass3"))
    out = pl.pallas_call(
        _pool_score_kernel,
        out_shape=jax.ShapeDtypeStruct((M, 1), f32),
        grid=(pl.cdiv(M, tm),),
        in_specs=[pl.BlockSpec((tm, N), lambda i: (i, 0)),      # PeT   (streamed)
                  _vmem_spec(),                                 # z row (1, N) resident
                  _smem_spec()],                                # bint scalar
        out_specs=pl.BlockSpec((tm, 1), lambda i: (i, 0)),
        compiler_params=pltpu.CompilerParams(
            dimension_semantics=("parallel",), vmem_limit_bytes=vmem_limit),
        cost_estimate=pl.CostEstimate(
            flops=3 * M * N, transcendentals=M,
            bytes_accessed=M * N * cbytes + N * 4 + M * 4),
    )(pet_s, z_row, bint)
    return out


# ----------------------------------------------------------------------------- reference

def _reference(x, adj, adj_v, adj_e, PeT, wv, Wg1, bg1, Wg2, bg2, Wint, bint):
    """Pure-JAX f32 reference of the original forward (unfused, double bias)."""
    w = wv[0, 0]
    a1 = adj_v * adj * w
    a2 = adj_e * adj * (2.0 - w)
    s1 = x @ Wg1
    h1 = jnp.maximum((a1 @ s1 + bg1) + (a2 @ s1 + bg1), 0.0)
    s2 = h1 @ Wg2
    h2 = jnp.maximum((a1 @ s2 + bg2) + (a2 @ s2 + bg2), 0.0)
    y = PeT @ h2
    return jax.nn.sigmoid(y @ Wint + bint)


if __name__ == "__main__":
    # Small synthetic shapes: N nodes, M edges (rows of PeT), nfeat -> nhid -> 1
    N, M, nfeat, nhid = 16, 8, 8, 32

    key = jax.random.PRNGKey(0)
    ks = jax.random.split(key, 16)

    x     = jax.random.normal(ks[0], (N, nfeat), dtype=jnp.float32)
    adj   = jax.random.uniform(ks[1], (N, N), dtype=jnp.float32)
    adj_v = (jax.random.uniform(ks[2], (N, N)) > 0.5).astype(jnp.float32)  # densified sparse
    adj_e = (jax.random.uniform(ks[3], (N, N)) > 0.5).astype(jnp.float32)  # densified sparse
    PeT   = (jax.random.uniform(ks[4], (M, N)) > 0.6).astype(jnp.float32)  # densified sparse
    wv    = jnp.array([[1.3]], dtype=jnp.float32)

    stdv = 1.0 / np.sqrt(nhid)
    Wg1 = jax.random.uniform(ks[5], (nfeat, nhid), minval=-stdv, maxval=stdv, dtype=jnp.float32)
    bg1 = jax.random.uniform(ks[6], (1, nhid),     minval=-stdv, maxval=stdv, dtype=jnp.float32)
    Wg2 = jax.random.uniform(ks[7], (nhid, nhid),  minval=-stdv, maxval=stdv, dtype=jnp.float32)
    bg2 = jax.random.uniform(ks[8], (1, nhid),     minval=-stdv, maxval=stdv, dtype=jnp.float32)
    # nn.Linear(nhid, 1): weight (1, nhid) stored pre-transposed as (nhid, 1)
    Wint = jax.random.uniform(ks[9],  (nhid, 1), minval=-stdv, maxval=stdv, dtype=jnp.float32)
    bint = jax.random.uniform(ks[10], (1, 1),    minval=-stdv, maxval=stdv, dtype=jnp.float32)
    # TODO(synk): self.w1 / self.w2 Linear layers are defined in __init__ but never
    # used in the reference forward, so they are not instantiated here.

    ref = _reference(x, adj, adj_v, adj_e, PeT, wv, Wg1, bg1, Wg2, bg2, Wint, bint)

    # Exact path (f32 MXU operands, packed binary masks are exact) — tight tolerance.
    out_f32 = jax.block_until_ready(
        ahdsle_forward(x, adj, adj_v, adj_e, PeT, wv,
                       Wg1, bg1, Wg2, bg2, Wint, bint,
                       compute_dtype=jnp.float32, pack_binary_masks=True))
    assert out_f32.shape == (M, 1)
    np.testing.assert_allclose(np.asarray(out_f32), np.asarray(ref), rtol=2e-5, atol=2e-5)

    # Default fast path (bf16 streams / MXU operands, f32 accumulation) — loosened
    # tolerance; re-validate at production N before relying on bf16 by default.
    out_bf16 = jax.block_until_ready(
        ahdsle_forward(x, adj, adj_v, adj_e, PeT, wv,
                       Wg1, bg1, Wg2, bg2, Wint, bint))
    assert out_bf16.shape == (M, 1)
    np.testing.assert_allclose(np.asarray(out_bf16), np.asarray(ref), rtol=5e-2, atol=5e-2)

    # General path: non-binary adjacency weights (no mask packing) and nfeat > nhid,
    # which exercises the x @ Wg1 pre-projection kernel — exact f32, tight tolerance.
    nfeat2 = 48
    x2     = jax.random.normal(ks[11], (N, nfeat2), dtype=jnp.float32)
    adj_v2 = jax.random.uniform(ks[12], (N, N), dtype=jnp.float32)
    adj_e2 = jax.random.uniform(ks[13], (N, N), dtype=jnp.float32)
    Wg1b   = jax.random.uniform(ks[14], (nfeat2, nhid), minval=-stdv, maxval=stdv,
                                dtype=jnp.float32)
    ref2 = _reference(x2, adj, adj_v2, adj_e2, PeT, wv, Wg1b, bg1, Wg2, bg2, Wint, bint)
    out2 = jax.block_until_ready(
        ahdsle_forward(x2, adj, adj_v2, adj_e2, PeT, wv,
                       Wg1b, bg1, Wg2, bg2, Wint, bint,
                       compute_dtype=jnp.float32, pack_binary_masks=False))
    assert out2.shape == (M, 1)
    np.testing.assert_allclose(np.asarray(out2), np.asarray(ref2), rtol=2e-5, atol=2e-5)

    print("KERNEL_OK")
</pallas_src>

<mosaic_0001>
module attributes {stable_mosaic.version = 11 : i64} {
  func.func @kernel(%arg0: i32, %arg1: memref<1x1xf32, #tpu.memory_space<smem>>, %arg2: memref<16x16xf32, #tpu.memory_space<vmem>>, %arg3: memref<16x16xi8, #tpu.memory_space<vmem>>, %arg4: memref<16x8xf32, #tpu.memory_space<vmem>>, %arg5: memref<8x32xf32, #tpu.memory_space<vmem>>, %arg6: memref<32x32xf32, #tpu.memory_space<vmem>>, %arg7: memref<1x32xf32, #tpu.memory_space<vmem>>, %arg8: memref<16x16xf32, #tpu.memory_space<vmem>>, %arg9: memref<16x32xf32, #tpu.memory_space<vmem>>) attributes {dimension_semantics = [#tpu.dimension_semantics<parallel>], iteration_bounds = array<i64: 1>, scalar_prefetch = 0 : i64, scratch_operands = 0 : i64, tpu.core_type = #tpu.core_type<tc>, window_params = [{transform_indices = @transform_0, window_bounds = array<i64: 1, 1>}, {transform_indices = @transform_1, window_bounds = array<i64: 16, 16>}, {transform_indices = @transform_2, window_bounds = array<i64: 16, 16>}, {pipeline_mode = #tpu.pipeline_mode<synchronous>, transform_indices = @transform_3, window_bounds = array<i64: 16, 8>}, {pipeline_mode = #tpu.pipeline_mode<synchronous>, transform_indices = @transform_4, window_bounds = array<i64: 8, 32>}, {pipeline_mode = #tpu.pipeline_mode<synchronous>, transform_indices = @transform_5, window_bounds = array<i64: 32, 32>}, {pipeline_mode = #tpu.pipeline_mode<synchronous>, transform_indices = @transform_6, window_bounds = array<i64: 1, 32>}, {transform_indices = @transform_7, window_bounds = array<i64: 16, 16>}, {transform_indices = @transform_8, window_bounds = array<i64: 16, 32>}]} {
    %c0 = arith.constant 0 : index
    %c0_0 = arith.constant 0 : index
    %0 = memref.load %arg1[%c0, %c0_0] : memref<1x1xf32, #tpu.memory_space<smem>>
    %c0_1 = arith.constant 0 : index
    %c0_2 = arith.constant 0 : index
    %1 = vector.load %arg3[%c0_1, %c0_2] : memref<16x16xi8, #tpu.memory_space<vmem>>, vector<16x16xi8>
    %2 = arith.extsi %1 : vector<16x16xi8> to vector<16x16xi32>
    %c1_i32 = arith.constant 1 : i32
    %3 = vector.broadcast %c1_i32 : i32 to vector<16x16xi32>
    %4 = arith.andi %2, %3 : vector<16x16xi32>
    %5 = arith.sitofp %4 : vector<16x16xi32> to vector<16x16xf32>
    %c1_i32_3 = arith.constant 1 : i32
    %6 = vector.broadcast %c1_i32_3 : i32 to vector<16x16xi32>
    %7 = arith.shrsi %2, %6 : vector<16x16xi32>
    %c1_i32_4 = arith.constant 1 : i32
    %8 = vector.broadcast %c1_i32_4 : i32 to vector<16x16xi32>
    %9 = arith.andi %7, %8 : vector<16x16xi32>
    %10 = arith.sitofp %9 : vector<16x16xi32> to vector<16x16xf32>
    %c0_5 = arith.constant 0 : index
    %c0_6 = arith.constant 0 : index
    %11 = vector.load %arg2[%c0_5, %c0_6] : memref<16x16xf32, #tpu.memory_space<vmem>>, vector<16x16xf32>
    %12 = vector.broadcast %0 : f32 to vector<16x16xf32>
    %13 = arith.mulf %5, %12 : vector<16x16xf32>
    %cst = arith.constant 2.000000e+00 : f32
    %14 = arith.subf %cst, %0 : f32
    %15 = vector.broadcast %14 : f32 to vector<16x16xf32>
    %16 = arith.mulf %10, %15 : vector<16x16xf32>
    %17 = arith.addf %13, %16 : vector<16x16xf32>
    %18 = arith.mulf %11, %17 : vector<16x16xf32>
    %c0_7 = arith.constant 0 : index
    %c0_8 = arith.constant 0 : index
    %19 = vector.load %arg8[%c0_7, %c0_8] : memref<16x16xf32, #tpu.memory_space<vmem>>, vector<16x16xf32>
    tpu.vector_store %arg8[%c0_7, %c0_8], %18 {strides = array<i32>} : memref<16x16xf32, #tpu.memory_space<vmem>>, vector<16x16xf32>,
    %c0_9 = arith.constant 0 : index
    %c0_10 = arith.constant 0 : index
    %20 = vector.load %arg4[%c0_9, %c0_10] : memref<16x8xf32, #tpu.memory_space<vmem>>, vector<16x8xf32>
    %cst_11 = arith.constant dense<0.000000e+00> : vector<16x8xf32>
    %21 = tpu.matmul %18, %20, %cst_11 {dimension_numbers = #tpu.dot_dimension_numbers<[1], [0], [0], [1], [0, 0, 1, 1], [], []>} : vector<16x16xf32>, vector<16x8xf32>, vector<16x8xf32> -> vector<16x8xf32>
    %c0_12 = arith.constant 0 : index
    %c0_13 = arith.constant 0 : index
    %22 = vector.load %arg5[%c0_12, %c0_13] : memref<8x32xf32, #tpu.memory_space<vmem>>, vector<8x32xf32>
    %cst_14 = arith.constant dense<0.000000e+00> : vector<16x32xf32>
    %23 = tpu.matmul %21, %22, %cst_14 {dimension_numbers = #tpu.dot_dimension_numbers<[1], [0], [0], [1], [0, 0, 1, 1], [], []>} : vector<16x8xf32>, vector<8x32xf32>, vector<16x32xf32> -> vector<16x32xf32>
    %c0_15 = arith.constant 0 : index
    %c0_16 = arith.constant 0 : index
    %24 = vector.load %arg7[%c0_15, %c0_16] : memref<1x32xf32, #tpu.memory_space<vmem>>, vector<1x32xf32>
    %25 = vector.broadcast %24 : vector<1x32xf32> to vector<16x32xf32>
    %26 = arith.addf %23, %25 : vector<16x32xf32>
    %cst_17 = arith.constant 0.000000e+00 : f32
    %27 = vector.broadcast %cst_17 : f32 to vector<16x32xf32>
    %28 = arith.maximumf %26, %27 : vector<16x32xf32>
    %c0_18 = arith.constant 0 : index
    %c0_19 = arith.constant 0 : index
    %29 = vector.load %arg6[%c0_18, %c0_19] : memref<32x32xf32, #tpu.memory_space<vmem>>, vector<32x32xf32>
    %cst_20 = arith.constant dense<0.000000e+00> : vector<16x32xf32>
    %30 = tpu.matmul %28, %29, %cst_20 {dimension_numbers = #tpu.dot_dimension_numbers<[1], [0], [0], [1], [0, 0, 1, 1], [], []>} : vector<16x32xf32>, vector<32x32xf32>, vector<16x32xf32> -> vector<16x32xf32>
    %c0_21 = arith.constant 0 : index
    %c0_22 = arith.constant 0 : index
    %31 = vector.load %arg9[%c0_21, %c0_22] : memref<16x32xf32, #tpu.memory_space<vmem>>, vector<16x32xf32>
    tpu.vector_store %arg9[%c0_21, %c0_22], %30 {strides = array<i32>} : memref<16x32xf32, #tpu.memory_space<vmem>>, vector<16x32xf32>,
    return
  }
  func.func @transform_0(%arg0: i32) -> (i32, i32) {
    %c0_i32 = arith.constant 0 : i32
    %c0_i32_0 = arith.constant 0 : i32
    %c0_i32_1 = arith.constant 0 : i32
    return %c0_i32, %c0_i32_0 : i32, i32
  }
  func.func @transform_1(%arg0: i32) -> (i32, i32) {
    %c0_i32 = arith.constant 0 : i32
    %c0_i32_0 = arith.constant 0 : i32
    return %arg0, %c0_i32 : i32, i32
  }
  func.func @transform_2(%arg0: i32) -> (i32, i32) {
    %c0_i32 = arith.constant 0 : i32
    %c0_i32_0 = arith.constant 0 : i32
    return %arg0, %c0_i32 : i32, i32
  }
  func.func @transform_3(%arg0: i32) -> (i32, i32) {
    %c0_i32 = arith.constant 0 : i32
    %c0_i32_0 = arith.constant 0 : i32
    %c0_i32_1 = arith.constant 0 : i32
    return %c0_i32, %c0_i32_0 : i32, i32
  }
  func.func @transform_4(%arg0: i32) -> (i32, i32) {
    %c0_i32 = arith.constant 0 : i32
    %c0_i32_0 = arith.constant 0 : i32
    %c0_i32_1 = arith.constant 0 : i32
    return %c0_i32, %c0_i32_0 : i32, i32
  }
  func.func @transform_5(%arg0: i32) -> (i32, i32) {
    %c0_i32 = arith.constant 0 : i32
    %c0_i32_0 = arith.constant 0 : i32
    %c0_i32_1 = arith.constant 0 : i32
    return %c0_i32, %c0_i32_0 : i32, i32
  }
  func.func @transform_6(%arg0: i32) -> (i32, i32) {
    %c0_i32 = arith.constant 0 : i32
    %c0_i32_0 = arith.constant 0 : i32
    %c0_i32_1 = arith.constant 0 : i32
    return %c0_i32, %c0_i32_0 : i32, i32
  }
  func.func @transform_7(%arg0: i32) -> (i32, i32) {
    %c0_i32 = arith.constant 0 : i32
    %c0_i32_0 = arith.constant 0 : i32
    return %arg0, %c0_i32 : i32, i32
  }
  func.func @transform_8(%arg0: i32) -> (i32, i32) {
    %c0_i32 = arith.constant 0 : i32
    %c0_i32_0 = arith.constant 0 : i32
    return %arg0, %c0_i32 : i32, i32
  }
}

</mosaic_0001>

<llo_original>
// kernel: tpu_custom_call.1
$region0: #{tpu_custom_call.1}
  #allocation0 [shape = 'u32[]', space=smem, size = 0x4, offset = 0x4, fixed_abs, tag = 'smem constant byte address 0x4 - core index']
  #allocation1 [shape = 'u32[144,128]{1,0:T(1,128)}', space=vmem, size = 0x12000, scoped, tag = 'internal scratch']
  #allocation2 [shape = 'f32[1,1]{1,0:T(1,128)S(6)}', space=smem, size = 0x200, scoped, tag = 'scoped memory for tpu_custom_call.1']
  %s0 = inlined_call_operand.<no memory space> [shape: f32[1,1], index: 0, kind: input, shape index: {}]
  %s1 = inlined_call_operand.hbm [shape: f32[16,16], index: 1, kind: input, shape index: {}]
  %s2 = inlined_call_operand.hbm [shape: s8[16,16], index: 2, kind: input, shape index: {}]
  %s3 = inlined_call_operand.vmem [shape: f32[16,8], index: 3, kind: input, shape index: {}]
  %s4 = inlined_call_operand.vmem [shape: f32[8,32], index: 4, kind: input, shape index: {}]
  %s5 = inlined_call_operand.vmem [shape: f32[32,32], index: 5, kind: input, shape index: {}]
  %s6 = inlined_call_operand.vmem [shape: f32[1,32], index: 6, kind: input, shape index: {}]
  %s7 = inlined_call_operand.hbm [shape: f32[16,16], index: 7, kind: output, shape index: {0}]
  %s8 = inlined_call_operand.hbm [shape: f32[16,32], index: 8, kind: output, shape index: {1}]
  %9 = xla_tuple %s7, %s8
  %s10 = sld [smem:[#allocation0]]
  $region54: #{tpu_custom_call.1} parent=0
    _
  %s12 = ssub.s32 1, %s10
  %s13 = scalar_select 0, %s12, %s10
  %14 = sst [smem:[#allocation2]] %s0
  $region1: #{tpu_custom_call.1} parent=0
    #allocation3 [shape = 'u8[8192]{0}', space=vmem, size = 0x2000, scoped, tag = 'input window, operand 1, single buffered']
    #allocation4 [shape = 's32[1]{0}', space=sflag, size = 0x4, scoped, tag = 'scoped memory for tpu_custom_call.1']
    #allocation5 [shape = 's32[1]{0}', space=sflag, size = 0x4, scoped, tag = 'scoped memory for tpu_custom_call.1']
    #allocation6 [shape = 'u8[2048]{0}', space=vmem, size = 0x800, scoped, tag = 'input window, operand 2, single buffered']
    #allocation7 [shape = 's32[1]{0}', space=sflag, size = 0x4, scoped, tag = 'scoped memory for tpu_custom_call.1']
    #allocation8 [shape = 'u8[8192]{0}', space=vmem, size = 0x2000, scoped, tag = 'output window, operand 0, single buffered']
    #allocation9 [shape = 'u8[8192]{0}', space=vmem, size = 0x2000, scoped, tag = 'output window, operand 1, single buffered']
    #allocation10 [shape = 's32[1]{0}', space=sflag, size = 0x4, scoped, tag = 'scoped memory for tpu_custom_call.1']
    %15 = vsyncpa [#allocation4], 0
    %16 = vsyncpa [#allocation7], 0
    %17 = vsyncpa [#allocation5], 0
    %18 = vsyncpa [#allocation10], 0
    // Predicated region
    $region2: #{tpu_custom_call.1} parent=1 // pred_check
      _
    $region3: #{tpu_custom_call.1} parent=1 // pred_check_branch
      %20 = sbr.rel (0) target = $region5
    $region4: #{tpu_custom_call.1} parent=1 // pred_region
      _
    $region5: #{tpu_custom_call.1} parent=1 // pred_fallthru
      _
    // Predicated region
    $region6: #{tpu_custom_call.1} parent=1 // pred_check
      _
    $region7: #{tpu_custom_call.1} parent=1 // pred_check_branch
      %22 = sbr.rel (0) target = $region9
    $region8: #{tpu_custom_call.1} parent=1 // pred_region
      %s24 = ssub.s32 256, 256
      %25 = vsyncadd [#allocation4], %s24
      %s26 = sshll.u32 [#allocation3], 4
      %s27 = int_to_ptr.vmem [resolvable:$true] %s26
      %32 = dma.hbm_to_vmem [thread:$0]  %s1, 256, %s27, [#allocation4], 128, 128, 8
    $region9: #{tpu_custom_call.1} parent=1 // pred_fallthru
      _
    // Predicated region
    $region10: #{tpu_custom_call.1} parent=1 // pred_check
      _
    $region11: #{tpu_custom_call.1} parent=1 // pred_check_branch
      %34 = sbr.rel (0) target = $region13
    $region12: #{tpu_custom_call.1} parent=1 // pred_region
      %s36 = ssub.s32 64, 64
      %37 = vsyncadd [#allocation7], %s36
      %s38 = sshll.u32 [#allocation6], 4
      %s39 = int_to_ptr.vmem [resolvable:$true] %s38
      %44 = dma.hbm_to_vmem [thread:$0]  %s2, 64, %s39, [#allocation7], 32, 32, 2
    $region13: #{tpu_custom_call.1} parent=1 // pred_fallthru
      _
    // Predicated region
    $region14: #{tpu_custom_call.1} parent=1 // pred_check
      _
    $region15: #{tpu_custom_call.1} parent=1 // pred_check_branch
      %46 = sbr.rel (0) target = $region17
    $region16: #{tpu_custom_call.1} parent=1 // pred_region
      _
    $region17: #{tpu_custom_call.1} parent=1 // pred_fallthru
      _
    // Predicated region
    $region18: #{tpu_custom_call.1} parent=1 // pred_check
      _
    $region19: #{tpu_custom_call.1} parent=1 // pred_check_branch
      %48 = sbr.rel (0) target = $region21
    $region20: #{tpu_custom_call.1} parent=1 // pred_region
      _
    $region21: #{tpu_custom_call.1} parent=1 // pred_fallthru
      _
    // Predicated region
    $region22: #{tpu_custom_call.1} parent=1 // pred_check
      _
    $region23: #{tpu_custom_call.1} parent=1 // pred_check_branch
      %50 = sbr.rel (0) target = $region25
    $region24: #{tpu_custom_call.1} parent=1 // pred_region
      _
    $region25: #{tpu_custom_call.1} parent=1 // pred_fallthru
      _
    // Predicated region
    $region26: #{tpu_custom_call.1} parent=1 // pred_check
      _
    $region27: #{tpu_custom_call.1} parent=1 // pred_check_branch
      %52 = sbr.rel (0) target = $region29
    $region28: #{tpu_custom_call.1} parent=1 // pred_region
      _
    $region29: #{tpu_custom_call.1} parent=1 // pred_fallthru
      _
    // Predicated region
    $region30: #{tpu_custom_call.1} parent=1 // pred_check
      _
    $region31: #{tpu_custom_call.1} parent=1 // pred_check_branch
      %54 = sbr.rel (0) target = $region33
    $region32: #{tpu_custom_call.1} parent=1 // pred_region
      %55 = dma.done [#allocation4], 256
    $region33: #{tpu_custom_call.1} parent=1 // pred_fallthru
      _
    // Predicated region
    $region34: #{tpu_custom_call.1} parent=1 // pred_check
      _
    $region35: #{tpu_custom_call.1} parent=1 // pred_check_branch
      %57 = sbr.rel (0) target = $region37
    $region36: #{tpu_custom_call.1} parent=1 // pred_region
      %58 = dma.done [#allocation7], 64
    $region37: #{tpu_custom_call.1} parent=1 // pred_fallthru
      _
    %s59 = sld [smem:[#allocation2]]
    %v60 = vld [vmem:[#allocation6] sm:$0x3]
    %v61 = vld [vmem:[#allocation6 + $0x2] sm:$0x3]
    %v62 = vunpack.c.0.s8 %v60
    %v63 = vunpack.c.0.s8 %v61
    %v64 = vand.u32 %v62, 1
    %v65 = vand.u32 %v63, 1
    %v66 = vcvt.s32.f32 %v64
    %v67 = vcvt.s32.f32 %v65
    %v68 = vshra.s32 %v62, 1
    %v69 = vshra.s32 %v63, 1
    %v70 = vand.u32 %v68, 1
    %v71 = vand.u32 %v69, 1
    %v72 = vcvt.s32.f32 %v70
    %v73 = vcvt.s32.f32 %v71
    %v74 = vld [vmem:[#allocation3] sm:$0xff]
    %v75 = vld [vmem:[#allocation3 + $0x8] sm:$0xff]
    %v76 = vstv %s59
    %v77 = vmul.f32 %v66, %v76
    %v78 = vmul.f32 %v67, %v76
    %s79 = ssub.f32 2.0, %s59
    %v80 = vstv %s79
    %v81 = vmul.f32 %v72, %v80
    %v82 = vmul.f32 %v73, %v80
    %v83 = vadd.f32 %v77, %v81
    %v84 = vadd.f32 %v78, %v82
    %v85 = vmul.f32 %v74, %v83
    %v86 = vmul.f32 %v75, %v84
    %vm87 = vcmask 130048
    %88 = vst.msk [vmem:[#allocation8] sm:$0xff] %vm87, %v85
    %89 = vst.msk [vmem:[#allocation8 + $0x8] sm:$0xff] %vm87, %v86
    %v90 = vld [vmem:[%s3] sm:$0xff]
    %v91 = vld [vmem:[%s3 + $0x8] sm:$0xff]
    %v93 = vsel %vm87, %v85, 0
    %v96 = vsel %vm87, %v86, 0
    %98 = vmatprep.subr.mxu0 0.0
    %99 = vmatpush1.msra.mxu0 %v90
    %100 = vmatprep.subr.mxu0 0.0
    %101 = vmatpush1.msra.mxu0 %v91
    %102 = vmatprep.subr.mxu0 0.0
    %103 = vmatpush1.msra.mxu0 0.0
    %104 = vmatprep.subr.mxu0 0.0
    %105 = vmatpush1.msra.mxu0 0.0
    %106 = vmatprep.subr.mxu0 0.0
    %107 = vmatpush1.msra.mxu0 0.0
    %108 = vmatprep.subr.mxu0 0.0
    %109 = vmatpush1.msra.mxu0 0.0
    %110 = vmatprep.subr.mxu0 0.0
    %111 = vmatpush1.msra.mxu0 0.0
    %112 = vmatprep.subr.mxu0 0.0
    %113 = vmatpush1.msra.mxu0 0.0
    %114 = vmatprep.subr.mxu0 0.0
    %115 = vmatpush1.msra.mxu0 0.0
    %116 = vmatprep.subr.mxu0 0.0
    %117 = vmatpush1.msra.mxu0 0.0
    %118 = vmatprep.subr.mxu0 0.0
    %119 = vmatpush1.msra.mxu0 0.0
    %120 = vmatprep.subr.mxu0 0.0
    %121 = vmatpush1.msra.mxu0 0.0
    %122 = vmatprep.subr.mxu0 0.0
    %123 = vmatpush1.msra.mxu0 0.0
    %124 = vmatprep.subr.mxu0 0.0
    %125 = vmatpush1.msra.mxu0 0.0
    %126 = vmatprep.subr.mxu0 0.0
    %127 = vmatpush1.msra.mxu0 0.0
    %128 = vmatprep.subr.mxu0 0.0
    %129 = vmatpush1.msra.mxu0 0.0
    %130 = vmatprep.subr.mxu0 0.0
    %131 = vmatpush1.msra.mxu0 0.0
    %132 = vmatprep.subr.mxu0 0.0
    %133 = vmatpush1.msra.mxu0 0.0
    %134 = vmatprep.subr.mxu0 0.0
    %135 = vmatpush1.msra.mxu0 0.0
    %136 = vmatprep.subr.mxu0 0.0
    %137 = vmatpush1.msra.mxu0 0.0
    %138 = vmatprep.subr.mxu0 0.0
    %139 = vmatpush1.msra.mxu0 0.0
    %140 = vmatprep.subr.mxu0 0.0
    %141 = vmatpush1.msra.mxu0 0.0
    %142 = vmatprep.subr.mxu0 0.0
    %143 = vmatpush1.msra.mxu0 0.0
    %144 = vmatprep.subr.mxu0 0.0
    %145 = vmatpush1.msra.mxu0 0.0
    %146 = vmatprep.subr.mxu0 0.0
    %147 = vmatpush1.msra.mxu0 0.0
    %148 = vmatprep.subr.mxu0 0.0
    %149 = vmatpush1.msra.mxu0 0.0
    %150 = vmatprep.subr.mxu0 0.0
    %151 = vmatpush1.msra.mxu0 0.0
    %152 = vmatprep.subr.mxu0 0.0
    %153 = vmatpush1.msra.mxu0 0.0
    %154 = vmatprep.subr.mxu0 0.0
    %155 = vmatpush1.msra.mxu0 0.0
    %156 = vmatprep.subr.mxu0 0.0
    %157 = vmatpush1.msra.mxu0 0.0
    %158 = vmatprep.subr.mxu0 0.0
    %159 = vmatpush1.msra.mxu0 0.0
    %160 = vmatprep.subr.mxu0 0.0
    %161 = vmatpush1.msra.mxu0 0.0
    %162 = vmatprep.mubr.f32.mxu0 0.0
    %163 = vmatmul.mubr.f32.gmra.mrb[0].mxu0 %v93
    %v164 = vpop.f32.mrb[0].mxu0
    %v165 = vadd.f32 0.0, %v164
    %v166 = vpop.f32.mrb[0].mxu0
    %167 = vmatprep.mubr.f32.mxu0 0.0
    %168 = vmatmul.mubr.f32.gmra.mrb[0].mxu0 %v96
    %v169 = vpop.f32.mrb[0].mxu0
    %v170 = vadd.f32 0.0, %v169
    %v171 = vpop.f32.mrb[0].mxu0
    %172 = vdwg.mxu0
    %v173 = vld [vmem:[%s4] sm:$0xff]
    %v174 = vld [vmem:[%s6] sm:$0x1]
    %v176 = vlaneseq
    %v177 = vshrl.u32 %v176, 7
    %v178 = vsub.s32 0, %v177
    %v179 = vrot.slane %v174, %v178
    %vm181 = vcmask 64512
    %v183 = vsel %vm181, %v165, 0
    %v186 = vsel %vm181, %v170, 0
    %188 = vmatprep.subr.mxu0 0.0
    %189 = vmatpush1.msra.mxu0 %v173
    %190 = vmatprep.subr.mxu0 0.0
    %191 = vmatpush1.msra.mxu0 0.0
    %192 = vmatprep.subr.mxu0 0.0
    %193 = vmatpush1.msra.mxu0 0.0
    %194 = vmatprep.subr.mxu0 0.0
    %195 = vmatpush1.msra.mxu0 0.0
    %196 = vmatprep.subr.mxu0 0.0
    %197 = vmatpush1.msra.mxu0 0.0
    %198 = vmatprep.subr.mxu0 0.0
    %199 = vmatpush1.msra.mxu0 0.0
    %200 = vmatprep.subr.mxu0 0.0
    %201 = vmatpush1.msra.mxu0 0.0
    %202 = vmatprep.subr.mxu0 0.0
    %203 = vmatpush1.msra.mxu0 0.0
    %204 = vmatprep.subr.mxu0 0.0
    %205 = vmatpush1.msra.mxu0 0.0
    %206 = vmatprep.subr.mxu0 0.0
    %207 = vmatpush1.msra.mxu0 0.0
    %208 = vmatprep.subr.mxu0 0.0
    %209 = vmatpush1.msra.mxu0 0.0
    %210 = vmatprep.subr.mxu0 0.0
    %211 = vmatpush1.msra.mxu0 0.0
    %212 = vmatprep.subr.mxu0 0.0
    %213 = vmatpush1.msra.mxu0 0.0
    %214 = vmatprep.subr.mxu0 0.0
    %215 = vmatpush1.msra.mxu0 0.0
    %216 = vmatprep.subr.mxu0 0.0
    %217 = vmatpush1.msra.mxu0 0.0
    %218 = vmatprep.subr.mxu0 0.0
    %219 = vmatpush1.msra.mxu0 0.0
    %220 = vmatprep.subr.mxu0 0.0
    %221 = vmatpush1.msra.mxu0 0.0
    %222 = vmatprep.subr.mxu0 0.0
    %223 = vmatpush1.msra.mxu0 0.0
    %224 = vmatprep.subr.mxu0 0.0
    %225 = vmatpush1.msra.mxu0 0.0
    %226 = vmatprep.subr.mxu0 0.0
    %227 = vmatpush1.msra.mxu0 0.0
    %228 = vmatprep.subr.mxu0 0.0
    %229 = vmatpush1.msra.mxu0 0.0
    %230 = vmatprep.subr.mxu0 0.0
    %231 = vmatpush1.msra.mxu0 0.0
    %232 = vmatprep.subr.mxu0 0.0
    %233 = vmatpush1.msra.mxu0 0.0
    %234 = vmatprep.subr.mxu0 0.0
    %235 = vmatpush1.msra.mxu0 0.0
    %236 = vmatprep.subr.mxu0 0.0
    %237 = vmatpush1.msra.mxu0 0.0
    %238 = vmatprep.subr.mxu0 0.0
    %239 = vmatpush1.msra.mxu0 0.0
    %240 = vmatprep.subr.mxu0 0.0
    %241 = vmatpush1.msra.mxu0 0.0
    %242 = vmatprep.subr.mxu0 0.0
    %243 = vmatpush1.msra.mxu0 0.0
    %244 = vmatprep.subr.mxu0 0.0
    %245 = vmatpush1.msra.mxu0 0.0
    %246 = vmatprep.subr.mxu0 0.0
    %247 = vmatpush1.msra.mxu0 0.0
    %248 = vmatprep.subr.mxu0 0.0
    %249 = vmatpush1.msra.mxu0 0.0
    %250 = vmatprep.subr.mxu0 0.0
    %251 = vmatpush1.msra.mxu0 0.0
    %252 = vmatprep.mubr.f32.mxu0 0.0
    %253 = vmatmul.mubr.f32.gmra.mrb[0].mxu0 %v183
    %v254 = vpop.f32.mrb[0].mxu0
    %v255 = vadd.f32 %v179, %v254
    %v256 = vpop.f32.mrb[0].mxu0
    %257 = vmatprep.mubr.f32.mxu0 0.0
    %258 = vmatmul.mubr.f32.gmra.mrb[0].mxu0 %v186
    %v259 = vpop.f32.mrb[0].mxu0
    %v260 = vadd.f32 %v179, %v259
    %v261 = vpop.f32.mrb[0].mxu0
    %262 = vdwg.mxu0
    %v263 = vmax.f32 %v255, 0.0
    %v264 = vmax.f32 %v260, 0.0
    %v265 = vld [vmem:[%s5] sm:$0xff]
    %v266 = vld [vmem:[%s5 + $0x8] sm:$0xff]
    %v267 = vld [vmem:[%s5 + $0x10] sm:$0xff]
    %v268 = vld [vmem:[%s5 + $0x18] sm:$0xff]
    %vm269 = vcmask 261120
    %v271 = vsel %vm269, %v263, 0
    %v274 = vsel %vm269, %v264, 0
    %276 = vmatprep.subr.mxu0 0.0
    %277 = vmatpush1.msra.mxu0 %v265
    %278 = vmatprep.subr.mxu0 0.0
    %279 = vmatpush1.msra.mxu0 %v266
    %280 = vmatprep.subr.mxu0 0.0
    %281 = vmatpush1.msra.mxu0 %v267
    %282 = vmatprep.subr.mxu0 0.0
    %283 = vmatpush1.msra.mxu0 %v268
    %284 = vmatprep.subr.mxu0 0.0
    %285 = vmatpush1.msra.mxu0 0.0
    %286 = vmatprep.subr.mxu0 0.0
    %287 = vmatpush1.msra.mxu0 0.0
    %288 = vmatprep.subr.mxu0 0.0
    %289 = vmatpush1.msra.mxu0 0.0
    %290 = vmatprep.subr.mxu0 0.0
    %291 = vmatpush1.msra.mxu0 0.0
    %292 = vmatprep.subr.mxu0 0.0
    %293 = vmatpush1.msra.mxu0 0.0
    %294 = vmatprep.subr.mxu0 0.0
    %295 = vmatpush1.msra.mxu0 0.0
    %296 = vmatprep.subr.mxu0 0.0
    %297 = vmatpush1.msra.mxu0 0.0
    %298 = vmatprep.subr.mxu0 0.0
    %299 = vmatpush1.msra.mxu0 0.0
    %300 = vmatprep.subr.mxu0 0.0
    %301 = vmatpush1.msra.mxu0 0.0
    %302 = vmatprep.subr.mxu0 0.0
    %303 = vmatpush1.msra.mxu0 0.0
    %304 = vmatprep.subr.mxu0 0.0
    %305 = vmatpush1.msra.mxu0 0.0
    %306 = vmatprep.subr.mxu0 0.0
    %307 = vmatpush1.msra.mxu0 0.0
    %308 = vmatprep.subr.mxu0 0.0
    %309 = vmatpush1.msra.mxu0 0.0
    %310 = vmatprep.subr.mxu0 0.0
    %311 = vmatpush1.msra.mxu0 0.0
    %312 = vmatprep.subr.mxu0 0.0
    %313 = vmatpush1.msra.mxu0 0.0
    %314 = vmatprep.subr.mxu0 0.0
    %315 = vmatpush1.msra.mxu0 0.0
    %316 = vmatprep.subr.mxu0 0.0
    %317 = vmatpush1.msra.mxu0 0.0
    %318 = vmatprep.subr.mxu0 0.0
    %319 = vmatpush1.msra.mxu0 0.0
    %320 = vmatprep.subr.mxu0 0.0
    %321 = vmatpush1.msra.mxu0 0.0
    %322 = vmatprep.subr.mxu0 0.0
    %323 = vmatpush1.msra.mxu0 0.0
    %324 = vmatprep.subr.mxu0 0.0
    %325 = vmatpush1.msra.mxu0 0.0
    %326 = vmatprep.subr.mxu0 0.0
    %327 = vmatpush1.msra.mxu0 0.0
    %328 = vmatprep.subr.mxu0 0.0
    %329 = vmatpush1.msra.mxu0 0.0
    %330 = vmatprep.subr.mxu0 0.0
    %331 = vmatpush1.msra.mxu0 0.0
    %332 = vmatprep.subr.mxu0 0.0
    %333 = vmatpush1.msra.mxu0 0.0
    %334 = vmatprep.subr.mxu0 0.0
    %335 = vmatpush1.msra.mxu0 0.0
    %336 = vmatprep.subr.mxu0 0.0
    %337 = vmatpush1.msra.mxu0 0.0
    %338 = vmatprep.subr.mxu0 0.0
    %339 = vmatpush1.msra.mxu0 0.0
    %340 = vmatprep.mubr.f32.mxu0 0.0
    %341 = vmatmul.mubr.f32.gmra.mrb[0].mxu0 %v271
    %v342 = vpop.f32.mrb[0].mxu0
    %v343 = vadd.f32 0.0, %v342
    %v344 = vpop.f32.mrb[0].mxu0
    %345 = vmatprep.mubr.f32.mxu0 0.0
    %346 = vmatmul.mubr.f32.gmra.mrb[0].mxu0 %v274
    %v347 = vpop.f32.mrb[0].mxu0
    %v348 = vadd.f32 0.0, %v347
    %v349 = vpop.f32.mrb[0].mxu0
    %350 = vdwg.mxu0
    %351 = vst.msk [vmem:[#allocation9] sm:$0xff] %vm269, %v343
    %352 = vst.msk [vmem:[#allocation9 + $0x8] sm:$0xff] %vm269, %v348
    // Predicated region
    $region38: #{tpu_custom_call.1} parent=1 // pred_check
      _
    $region39: #{tpu_custom_call.1} parent=1 // pred_check_branch
      %354 = sbr.rel (0) target = $region41
    $region40: #{tpu_custom_call.1} parent=1 // pred_region
      %s356 = ssub.s32 256, 256
      %357 = vsyncadd [#allocation5], %s356
      %s358 = sshll.u32 [#allocation8], 4
      %s359 = int_to_ptr.vmem [resolvable:$true] %s358
      %364 = dma.vmem_to_hbm [thread:$0]  %s359, 256, %s7, [#allocation5], 128, 128, 8
    $region41: #{tpu_custom_call.1} parent=1 // pred_fallthru
      _
    // Predicated region
    $region42: #{tpu_custom_call.1} parent=1 // pred_check
      _
    $region43: #{tpu_custom_call.1} parent=1 // pred_check_branch
      %366 = sbr.rel (0) target = $region45
    $region44: #{tpu_custom_call.1} parent=1 // pred_region
      %s368 = ssub.s32 256, 256
      %369 = vsyncadd [#allocation10], %s368
      %s370 = sshll.u32 [#allocation9], 4
      %s371 = int_to_ptr.vmem [resolvable:$true] %s370
      %376 = dma.vmem_to_hbm [thread:$0]  %s371, 256, %s8, [#allocation10], 128, 128, 8
    $region45: #{tpu_custom_call.1} parent=1 // pred_fallthru
      _
    // Predicated region
    $region46: #{tpu_custom_call.1} parent=1 // pred_check
      _
    $region47: #{tpu_custom_call.1} parent=1 // pred_check_branch
      %378 = sbr.rel (0) target = $region49
    $region48: #{tpu_custom_call.1} parent=1 // pred_region
      %379 = dma.done [#allocation5], 256
    $region49: #{tpu_custom_call.1} parent=1 // pred_fallthru
      _
    // Predicated region
    $region50: #{tpu_custom_call.1} parent=1 // pred_check
      _
    $region51: #{tpu_custom_call.1} parent=1 // pred_check_branch
      %381 = sbr.rel (0) target = $region53
    $region52: #{tpu_custom_call.1} parent=1 // pred_region
      %382 = dma.done [#allocation10], 256
    $region53: #{tpu_custom_call.1} parent=1 // pred_fallthru
      _
    %383 = vsyncpa [#allocation4], 1
    %384 = vsyncpa [#allocation7], 1
    %385 = vsyncpa [#allocation5], 1
    %386 = vsyncpa [#allocation10], 1

</llo_original>
